<compile_context>
chip_gen: v7x
topology: tpu7x:2x2x1
jax: 0.10.0
libtpu: 0.0.40
codegen_flags: <defaults>
</compile_context>

<pallas_src>
import math

import jax
import jax.numpy as jnp
from jax.experimental import pallas as pl
from jax.experimental.pallas import tpu as pltpu

LANE = 128     # TPU lane width (last-dim tiling quantum, f32)
SUBLANE = 8    # f32 sublane quantum (second-to-last dim)


def _round_up(x, m):
    return ((x + m - 1) // m) * m


def _sigmoid(x):
    # sigmoid(x) = 0.5 * (tanh(x/2) + 1): a single EUP tanh instead of
    # exp + divide (halves EUP pushes for the gate stage).
    return 0.5 * (jnp.tanh(0.5 * x) + 1.0)


def gru_seq_kernel(x_ref, h0_ref, w_x_all_ref, wzr_h_ref, w_rh_ref,
                   hs_ref, h_scr):
    """One GRU step per grid point; grid = (batch_blocks, T)."""
    t = pl.program_id(1)

    @pl.when(t == 0)
    def _():
        # (Re)load the initial hidden state at the start of each batch block.
        h_scr[...] = h0_ref[...]

    h = h_scr[...]                                  # (tb, Hp)   f32, resident
    x = x_ref[0]                                    # (tb, n_in) f32
    Hp = h.shape[1]                                 # static, multiple of 128
    mm_dtype = w_x_all_ref.dtype                    # bf16 (default) or f32

    # One wide x-side matmul; columns [0:Hp)=z, [Hp:2Hp)=r, [2Hp:3Hp)=hhat.
    x_all = jnp.dot(x.astype(mm_dtype), w_x_all_ref[...],
                    preferred_element_type=jnp.float32)         # (tb, 3*Hp)

    # z / r gates: fused h-side matmul of width 2*Hp.
    zr_pre = x_all[:, :2 * Hp] + jnp.dot(
        h.astype(mm_dtype), wzr_h_ref[...],
        preferred_element_type=jnp.float32)
    zr = _sigmoid(zr_pre)                           # f32 elementwise
    z_t = zr[:, :Hp]                                # 128-aligned lane slices
    r_t = zr[:, Hp:]

    # Candidate state: h_hat = tanh([r*h, x] @ W)
    hh_pre = x_all[:, 2 * Hp:] + jnp.dot(
        (r_t * h).astype(mm_dtype), w_rh_ref[...],
        preferred_element_type=jnp.float32)
    h_hat = jnp.tanh(hh_pre)

    # h_t = (1 - z)*h + z*hhat  ==  h + z*(hhat - h)   (all f32)
    h_new = h + z_t * (h_hat - h)
    h_scr[...] = h_new
    hs_ref[0] = h_new.astype(hs_ref.dtype)


def prepare_gru_weights(W_z, W_r, W, n_in, n_hidden,
                        param_dtype=jnp.bfloat16):
    """One-time weight prep (call ONCE, outside any timestep loop):
    split by the two concat orders, fuse along the lane dim
    ([z|r|hhat] for the x side, [z|r] for the h side), zero-pad the hidden
    dim to a multiple of 128, and cast to the MXU input dtype."""
    assert W_z.shape == (n_in + n_hidden, n_hidden)
    assert W_r.shape == (n_in + n_hidden, n_hidden)
    assert W.shape == (n_in + n_hidden, n_hidden)

    Hp = _round_up(n_hidden, LANE)
    assert Hp % LANE == 0            # guarantees copy-free lane slices
    pad_n = Hp - n_hidden

    def pad_cols(w):                 # pad output (lane) dim with zeros
        return jnp.pad(w, ((0, 0), (0, pad_n)))

    # Row split matching the concat orders in forward().
    wz_x, wz_h = W_z[:n_in], W_z[n_in:]
    wr_x, wr_h = W_r[:n_in], W_r[n_in:]
    w_rh, w_x = W[:n_hidden], W[n_hidden:]

    # x-side fused [z | r | hhat]  -> (n_in, 3*Hp)
    w_x_all = jnp.concatenate(
        [pad_cols(wz_x), pad_cols(wr_x), pad_cols(w_x)], axis=1)
    # h-side z/r fused             -> (Hp, 2*Hp)  (padded h rows are inert)
    wzr_h = jnp.pad(jnp.concatenate([pad_cols(wz_h), pad_cols(wr_h)], axis=1),
                    ((0, pad_n), (0, 0)))
    # h-side candidate             -> (Hp, Hp)
    w_rh_p = jnp.pad(pad_cols(w_rh), ((0, pad_n), (0, 0)))

    return {
        "w_x_all": w_x_all.astype(param_dtype),
        "wzr_h": wzr_h.astype(param_dtype),
        "w_rh": w_rh_p.astype(param_dtype),
        "n_in": n_in, "n_hidden": n_hidden, "Hp": Hp,
    }


def gru_sequence_forward(xs, h0, prepped):
    """Apply the GRUCell over a time axis in ONE pallas_call.

    xs: (T, B, n_in) f32, h0: (B, n_hidden) f32 -> (T, B, n_hidden) f32,
    identical to calling GRUCell.forward T times and stacking the results.
    """
    T, B, n_in = xs.shape
    n_hidden, Hp = prepped["n_hidden"], prepped["Hp"]
    assert n_in == prepped["n_in"]
    assert h0.shape == (B, n_hidden)

    # Batch block: one MXU-height block if the batch is large, else the whole
    # (sublane-padded) batch in a single block.
    tb = 256 if B > 256 else _round_up(B, SUBLANE)
    Bp = _round_up(B, tb)
    nb = Bp // tb

    if Bp != B:
        xs = jnp.pad(xs, ((0, 0), (0, Bp - B), (0, 0)))
        h0 = jnp.pad(h0, ((0, Bp - B), (0, 0)))
    if Hp != n_hidden:
        h0 = jnp.pad(h0, ((0, 0), (0, Hp - n_hidden)))
    h0 = h0.astype(jnp.float32)

    w_x_all, wzr_h, w_rh = prepped["w_x_all"], prepped["wzr_h"], prepped["w_rh"]
    weight_bytes = sum(int(w.size) * w.dtype.itemsize
                       for w in (w_x_all, wzr_h, w_rh))
    # Budget VMEM with v7x (64 MiB physical) in mind; tiny here.
    vmem_limit = min(48 << 20, max(32 << 20, 2 * weight_bytes + (8 << 20)))

    grid_spec = pltpu.PrefetchScalarGridSpec(
        num_scalar_prefetch=0,
        grid=(nb, T),
        in_specs=[
            # x_t streamed over the (inner, "arbitrary") time axis.
            pl.BlockSpec((1, tb, n_in), lambda b, t: (t, b, 0)),
            # h0: fetched once per batch block (constant over t).
            pl.BlockSpec((tb, Hp), lambda b, t: (b, 0)),
            # Weights: constant index_maps -> DMA'd once, stay VMEM-resident.
            pl.BlockSpec(w_x_all.shape, lambda b, t: (0, 0)),
            pl.BlockSpec(wzr_h.shape, lambda b, t: (0, 0)),
            pl.BlockSpec(w_rh.shape, lambda b, t: (0, 0)),
        ],
        out_specs=pl.BlockSpec((1, tb, Hp), lambda b, t: (t, b, 0)),
        scratch_shapes=[pltpu.VMEM((tb, Hp), jnp.float32)],   # resident h
    )

    hs_p = pl.pallas_call(
        gru_seq_kernel,
        out_shape=jax.ShapeDtypeStruct((T, Bp, Hp), jnp.float32),
        grid_spec=grid_spec,
        compiler_params=pltpu.CompilerParams(
            dimension_semantics=("parallel", "arbitrary"),
            vmem_limit_bytes=vmem_limit),
    )(xs, h0, w_x_all, wzr_h, w_rh)

    return hs_p[:, :B, :n_hidden]


def gru_cell_forward(x_t, h_t1, prepped):
    """Single GRUCell.forward step (the module's exact semantics)."""
    return gru_sequence_forward(x_t[None], h_t1, prepped)[0]


def gru_cell_reference(x_t, h_t1, W_z, W_r, W, mm_dtype=jnp.float32):
    """Pure-JAX reference mirroring the PyTorch forward.  mm_dtype casts the
    matmul inputs (to validate the bf16-MXU path apples-to-apples)."""
    c = lambda a: a.astype(mm_dtype)
    f32 = jnp.float32
    xt_ht1 = jnp.concatenate([c(x_t), c(h_t1)], axis=1)
    z_t = jax.nn.sigmoid(jnp.dot(xt_ht1, c(W_z), preferred_element_type=f32))
    r_t = jax.nn.sigmoid(jnp.dot(xt_ht1, c(W_r), preferred_element_type=f32))
    xr_ht1 = jnp.concatenate([c(r_t * h_t1), c(x_t)], axis=1)
    h_hat_t = jnp.tanh(jnp.dot(xr_ht1, c(W), preferred_element_type=f32))
    return (1.0 - z_t) * h_t1 + z_t * h_hat_t


if __name__ == "__main__":
    B, n_in, n_hidden, T = 8, 16, 32, 8

    key = jax.random.PRNGKey(0)
    k_x, k_h, k_wz, k_wr, k_w = jax.random.split(key, 5)

    # init_parameters(): uniform(-std, std), std = 1/sqrt(n_hidden).
    std = 1.0 / math.sqrt(n_hidden)
    W_z = jax.random.uniform(k_wz, (n_in + n_hidden, n_hidden),
                             minval=-std, maxval=std, dtype=jnp.float32)
    W_r = jax.random.uniform(k_wr, (n_in + n_hidden, n_hidden),
                             minval=-std, maxval=std, dtype=jnp.float32)
    W = jax.random.uniform(k_w, (n_in + n_hidden, n_hidden),
                           minval=-std, maxval=std, dtype=jnp.float32)

    xs = jax.random.normal(k_x, (T, B, n_in), dtype=jnp.float32)
    h0 = jax.random.normal(k_h, (B, n_hidden), dtype=jnp.float32)

    # One-time weight prep (hoisted out of the time loop).
    prep_f32 = prepare_gru_weights(W_z, W_r, W, n_in, n_hidden,
                                   param_dtype=jnp.float32)
    prep_bf16 = prepare_gru_weights(W_z, W_r, W, n_in, n_hidden,
                                    param_dtype=jnp.bfloat16)

    # Pure-JAX sequence references.
    def scan_ref(mm_dtype):
        def step(h, x):
            h2 = gru_cell_reference(x, h, W_z, W_r, W, mm_dtype=mm_dtype)
            return h2, h2
        _, out = jax.lax.scan(step, h0, xs)
        return out

    ref_f32 = jax.block_until_ready(scan_ref(jnp.float32))
    ref_bf16 = jax.block_until_ready(scan_ref(jnp.bfloat16))

    # 1) Module-exact single step (f32 everywhere).
    h1 = jax.block_until_ready(gru_cell_forward(xs[0], h0, prep_f32))
    assert h1.shape == (B, n_hidden)
    assert jnp.allclose(h1, ref_f32[0], atol=1e-5, rtol=1e-5)

    # 2) Time-fused T-step sequence, f32 path (matches T calls of forward()).
    hs_f32 = jax.block_until_ready(gru_sequence_forward(xs, h0, prep_f32))
    assert hs_f32.shape == (T, B, n_hidden)
    assert jnp.allclose(hs_f32, ref_f32, atol=1e-4, rtol=1e-4)

    # 3) Time-fused sequence with bf16 MXU inputs / f32 accumulation,
    #    validated against a reference that applies the same input casts.
    hs_bf16 = jax.block_until_ready(gru_sequence_forward(xs, h0, prep_bf16))
    assert hs_bf16.shape == (T, B, n_hidden)
    assert jnp.allclose(hs_bf16, ref_bf16, atol=5e-3, rtol=5e-3)

    print("KERNEL_OK")
</pallas_src>

<mosaic_0001>
module attributes {stable_mosaic.version = 11 : i64} {
  func.func @gru_seq_kernel(%arg0: i32, %arg1: i32, %arg2: memref<1x8x16xf32, #tpu.memory_space<vmem>>, %arg3: memref<8x128xf32, #tpu.memory_space<vmem>>, %arg4: memref<16x384xf32, #tpu.memory_space<vmem>>, %arg5: memref<128x256xf32, #tpu.memory_space<vmem>>, %arg6: memref<128x128xf32, #tpu.memory_space<vmem>>, %arg7: memref<1x8x128xf32, #tpu.memory_space<vmem>>, %arg8: memref<8x128xf32, #tpu.memory_space<vmem>>) attributes {dimension_semantics = [#tpu.dimension_semantics<parallel>, #tpu.dimension_semantics<arbitrary>], iteration_bounds = array<i64: 1, 1>, scalar_prefetch = 0 : i64, scratch_operands = 1 : i64, tpu.core_type = #tpu.core_type<tc>, window_params = [{transform_indices = @transform_0, window_bounds = array<i64: 1, 8, 16>}, {transform_indices = @transform_1, window_bounds = array<i64: 8, 128>}, {pipeline_mode = #tpu.pipeline_mode<synchronous>, transform_indices = @transform_2, window_bounds = array<i64: 16, 384>}, {pipeline_mode = #tpu.pipeline_mode<synchronous>, transform_indices = @transform_3, window_bounds = array<i64: 128, 256>}, {pipeline_mode = #tpu.pipeline_mode<synchronous>, transform_indices = @transform_4, window_bounds = array<i64: 128, 128>}, {transform_indices = @transform_5, window_bounds = array<i64: 1, 8, 128>}]} {
    %c0_i32 = arith.constant 0 : i32
    %0 = arith.cmpi eq, %arg1, %c0_i32 : i32
    %1 = arith.extui %0 : i1 to i32
    %c0_i32_0 = arith.constant 0 : i32
    %2 = arith.cmpi ne, %1, %c0_i32_0 : i32
    scf.if %2 {
      %c0_21 = arith.constant 0 : index
      %c0_22 = arith.constant 0 : index
      %34 = vector.load %arg3[%c0_21, %c0_22] : memref<8x128xf32, #tpu.memory_space<vmem>>, vector<8x128xf32>
      %c0_23 = arith.constant 0 : index
      %c0_24 = arith.constant 0 : index
      %35 = vector.load %arg8[%c0_23, %c0_24] : memref<8x128xf32, #tpu.memory_space<vmem>>, vector<8x128xf32>
      tpu.vector_store %arg8[%c0_23, %c0_24], %34 {strides = array<i32>} : memref<8x128xf32, #tpu.memory_space<vmem>>, vector<8x128xf32>,
    } else {
    }
    %c0 = arith.constant 0 : index
    %c0_1 = arith.constant 0 : index
    %3 = vector.load %arg8[%c0, %c0_1] : memref<8x128xf32, #tpu.memory_space<vmem>>, vector<8x128xf32>
    %c0_2 = arith.constant 0 : index
    %c0_3 = arith.constant 0 : index
    %c0_4 = arith.constant 0 : index
    %4 = vector.load %arg2[%c0_2, %c0_3, %c0_4] : memref<1x8x16xf32, #tpu.memory_space<vmem>>, vector<1x8x16xf32>
    %5 = vector.shape_cast %4 : vector<1x8x16xf32> to vector<8x16xf32>
    %c0_5 = arith.constant 0 : index
    %c0_6 = arith.constant 0 : index
    %6 = vector.load %arg4[%c0_5, %c0_6] : memref<16x384xf32, #tpu.memory_space<vmem>>, vector<16x384xf32>
    %cst = arith.constant dense<0.000000e+00> : vector<8x384xf32>
    %7 = tpu.matmul %5, %6, %cst {dimension_numbers = #tpu.dot_dimension_numbers<[1], [0], [0], [1], [0, 0, 1, 1], [], []>} : vector<8x16xf32>, vector<16x384xf32>, vector<8x384xf32> -> vector<8x384xf32>
    %8 = vector.extract_strided_slice %7 {offsets = [0, 0], sizes = [8, 256], strides = [1, 1]} : vector<8x384xf32> to vector<8x256xf32>
    %c0_7 = arith.constant 0 : index
    %c0_8 = arith.constant 0 : index
    %9 = vector.load %arg5[%c0_7, %c0_8] : memref<128x256xf32, #tpu.memory_space<vmem>>, vector<128x256xf32>
    %cst_9 = arith.constant dense<0.000000e+00> : vector<8x256xf32>
    %10 = tpu.matmul %3, %9, %cst_9 {dimension_numbers = #tpu.dot_dimension_numbers<[1], [0], [0], [1], [0, 0, 1, 1], [], []>} : vector<8x128xf32>, vector<128x256xf32>, vector<8x256xf32> -> vector<8x256xf32>
    %11 = arith.addf %8, %10 : vector<8x256xf32>
    %cst_10 = arith.constant 5.000000e-01 : f32
    %12 = vector.broadcast %cst_10 : f32 to vector<8x256xf32>
    %13 = arith.mulf %12, %11 : vector<8x256xf32>
    %14 = math.tanh %13 : vector<8x256xf32>
    %cst_11 = arith.constant 1.000000e+00 : f32
    %15 = vector.broadcast %cst_11 : f32 to vector<8x256xf32>
    %16 = arith.addf %14, %15 : vector<8x256xf32>
    %cst_12 = arith.constant 5.000000e-01 : f32
    %17 = vector.broadcast %cst_12 : f32 to vector<8x256xf32>
    %18 = arith.mulf %17, %16 : vector<8x256xf32>
    %19 = vector.extract_strided_slice %18 {offsets = [0, 0], sizes = [8, 128], strides = [1, 1]} : vector<8x256xf32> to vector<8x128xf32>
    %20 = vector.extract_strided_slice %18 {offsets = [0, 128], sizes = [8, 128], strides = [1, 1]} : vector<8x256xf32> to vector<8x128xf32>
    %21 = vector.extract_strided_slice %7 {offsets = [0, 256], sizes = [8, 128], strides = [1, 1]} : vector<8x384xf32> to vector<8x128xf32>
    %22 = arith.mulf %20, %3 : vector<8x128xf32>
    %c0_13 = arith.constant 0 : index
    %c0_14 = arith.constant 0 : index
    %23 = vector.load %arg6[%c0_13, %c0_14] : memref<128x128xf32, #tpu.memory_space<vmem>>, vector<128x128xf32>
    %cst_15 = arith.constant dense<0.000000e+00> : vector<8x128xf32>
    %24 = tpu.matmul %22, %23, %cst_15 {dimension_numbers = #tpu.dot_dimension_numbers<[1], [0], [0], [1], [0, 0, 1, 1], [], []>} : vector<8x128xf32>, vector<128x128xf32>, vector<8x128xf32> -> vector<8x128xf32>
    %25 = arith.addf %21, %24 : vector<8x128xf32>
    %26 = math.tanh %25 : vector<8x128xf32>
    %27 = arith.subf %26, %3 : vector<8x128xf32>
    %28 = arith.mulf %19, %27 : vector<8x128xf32>
    %29 = arith.addf %3, %28 : vector<8x128xf32>
    %c0_16 = arith.constant 0 : index
    %c0_17 = arith.constant 0 : index
    %30 = vector.load %arg8[%c0_16, %c0_17] : memref<8x128xf32, #tpu.memory_space<vmem>>, vector<8x128xf32>
    tpu.vector_store %arg8[%c0_16, %c0_17], %29 {strides = array<i32>} : memref<8x128xf32, #tpu.memory_space<vmem>>, vector<8x128xf32>,
    %c0_18 = arith.constant 0 : index
    %c0_19 = arith.constant 0 : index
    %c0_20 = arith.constant 0 : index
    %31 = vector.load %arg7[%c0_18, %c0_19, %c0_20] : memref<1x8x128xf32, #tpu.memory_space<vmem>>, vector<1x8x128xf32>
    %32 = vector.shape_cast %31 : vector<1x8x128xf32> to vector<8x128xf32>
    %33 = vector.shape_cast %29 : vector<8x128xf32> to vector<1x8x128xf32>
    tpu.vector_store %arg7[%c0_18, %c0_19, %c0_20], %33 {strides = array<i32>} : memref<1x8x128xf32, #tpu.memory_space<vmem>>, vector<1x8x128xf32>,
    return
  }
  func.func @transform_0(%arg0: i32, %arg1: i32) -> (i32, i32, i32) {
    %c0_i32 = arith.constant 0 : i32
    %c0_i32_0 = arith.constant 0 : i32
    return %arg1, %arg0, %c0_i32 : i32, i32, i32
  }
  func.func @transform_1(%arg0: i32, %arg1: i32) -> (i32, i32) {
    %c0_i32 = arith.constant 0 : i32
    %c0_i32_0 = arith.constant 0 : i32
    return %arg0, %c0_i32 : i32, i32
  }
  func.func @transform_2(%arg0: i32, %arg1: i32) -> (i32, i32) {
    %c0_i32 = arith.constant 0 : i32
    %c0_i32_0 = arith.constant 0 : i32
    %c0_i32_1 = arith.constant 0 : i32
    return %c0_i32, %c0_i32_0 : i32, i32
  }
  func.func @transform_3(%arg0: i32, %arg1: i32) -> (i32, i32) {
    %c0_i32 = arith.constant 0 : i32
    %c0_i32_0 = arith.constant 0 : i32
    %c0_i32_1 = arith.constant 0 : i32
    return %c0_i32, %c0_i32_0 : i32, i32
  }
  func.func @transform_4(%arg0: i32, %arg1: i32) -> (i32, i32) {
    %c0_i32 = arith.constant 0 : i32
    %c0_i32_0 = arith.constant 0 : i32
    %c0_i32_1 = arith.constant 0 : i32
    return %c0_i32, %c0_i32_0 : i32, i32
  }
  func.func @transform_5(%arg0: i32, %arg1: i32) -> (i32, i32, i32) {
    %c0_i32 = arith.constant 0 : i32
    %c0_i32_0 = arith.constant 0 : i32
    return %arg1, %arg0, %c0_i32 : i32, i32, i32
  }
}

</mosaic_0001>

<llo_original>
// kernel: tpu_custom_call.1
$region0: #{tpu_custom_call.1}
  #allocation0 [shape = 'u32[]', space=smem, size = 0x4, offset = 0x4, fixed_abs, tag = 'smem constant byte address 0x4 - core index']
  #allocation1 [shape = 'u32[144,128]{1,0:T(1,128)}', space=vmem, size = 0x12000, scoped, tag = 'internal scratch']
  #allocation2 [shape = 'f32[8,128]{1,0:T(8,128)}', space=vmem, size = 0x1000, scoped, tag = 'scratch operand']
  %s0 = inlined_call_operand.hbm [shape: f32[1,8,16], index: 0, kind: input, shape index: {}]
  %s1 = inlined_call_operand.hbm [shape: f32[8,128], index: 1, kind: input, shape index: {}]
  %s2 = inlined_call_operand.hbm [shape: f32[16,384], index: 2, kind: input, shape index: {}]
  %s3 = inlined_call_operand.hbm [shape: f32[128,256], index: 3, kind: input, shape index: {}]
  %s4 = inlined_call_operand.hbm [shape: f32[128,128], index: 4, kind: input, shape index: {}]
  %s5 = inlined_call_operand.hbm [shape: f32[1,8,128], index: 5, kind: output, shape index: {}]
  %s6 = sld [smem:[#allocation0]]
  $region54: #{tpu_custom_call.1} parent=0
    _
  %s8 = ssub.s32 1, %s6
  %s9 = scalar_select 0, %s8, %s6
  $region1: #{tpu_custom_call.1} parent=0
    #allocation3 [shape = 'u8[4096]{0}', space=vmem, size = 0x1000, scoped, tag = 'input window, operand 0, single buffered']
    #allocation4 [shape = 's32[1]{0}', space=sflag, size = 0x4, scoped, tag = 'scoped memory for tpu_custom_call.1']
    #allocation5 [shape = 's32[1]{0}', space=sflag, size = 0x4, scoped, tag = 'scoped memory for tpu_custom_call.1']
    #allocation6 [shape = 'u8[4096]{0}', space=vmem, size = 0x1000, scoped, tag = 'input window, operand 1, single buffered']
    #allocation7 [shape = 's32[1]{0}', space=sflag, size = 0x4, scoped, tag = 'scoped memory for tpu_custom_call.1']
    #allocation8 [shape = 'u8[24576]{0}', space=vmem, size = 0x6000, scoped, tag = 'input window, operand 2, single buffered']
    #allocation9 [shape = 'u8[131072]{0}', space=vmem, size = 0x20000, scoped, tag = 'input window, operand 3, single buffered']
    #allocation10 [shape = 's32[1]{0}', space=sflag, size = 0x4, scoped, tag = 'scoped memory for tpu_custom_call.1']
    #allocation11 [shape = 'u8[65536]{0}', space=vmem, size = 0x10000, scoped, tag = 'input window, operand 4, single buffered']
    #allocation12 [shape = 'u8[4096]{0}', space=vmem, size = 0x1000, scoped, tag = 'output window, operand 0, single buffered']
    %10 = vsyncpa [#allocation4], 0
    %11 = vsyncpa [#allocation7], 0
    %12 = vsyncpa [#allocation10], 0
    %13 = vsyncpa [#allocation5], 0
    // Predicated region
    $region2: #{tpu_custom_call.1} parent=1 // pred_check
      _
    $region3: #{tpu_custom_call.1} parent=1 // pred_check_branch
      %15 = sbr.rel (0) target = $region5
    $region4: #{tpu_custom_call.1} parent=1 // pred_region
      %s17 = ssub.s32 128, 128
      %18 = vsyncadd [#allocation4], %s17
      %s20 = sshll.u32 [#allocation3], 4
      %s21 = int_to_ptr.vmem [resolvable:$true] %s20
      %23 = dma.hbm_to_vmem [thread:$0]  %s0, 128, %s21, [#allocation4]
    $region5: #{tpu_custom_call.1} parent=1 // pred_fallthru
      _
    // Predicated region
    $region6: #{tpu_custom_call.1} parent=1 // pred_check
      _
    $region7: #{tpu_custom_call.1} parent=1 // pred_check_branch
      %25 = sbr.rel (0) target = $region9
    $region8: #{tpu_custom_call.1} parent=1 // pred_region
      %s27 = ssub.s32 128, 128
      %28 = vsyncadd [#allocation7], %s27
      %s30 = sshll.u32 [#allocation6], 4
      %s31 = int_to_ptr.vmem [resolvable:$true] %s30
      %33 = dma.hbm_to_vmem [thread:$0]  %s1, 128, %s31, [#allocation7]
    $region9: #{tpu_custom_call.1} parent=1 // pred_fallthru
      _
    // Predicated region
    $region10: #{tpu_custom_call.1} parent=1 // pred_check
      _
    $region11: #{tpu_custom_call.1} parent=1 // pred_check_branch
      %35 = sbr.rel (0) target = $region13
    $region12: #{tpu_custom_call.1} parent=1 // pred_region
      %s37 = ssub.s32 768, 768
      %38 = vsyncadd [#allocation7], %s37
      %s39 = sshll.u32 [#allocation8], 4
      %s40 = int_to_ptr.vmem [resolvable:$true] %s39
      %45 = dma.hbm_to_vmem [thread:$0]  %s2, 768, %s40, [#allocation7], 384, 384, 24
    $region13: #{tpu_custom_call.1} parent=1 // pred_fallthru
      _
    // Predicated region
    $region14: #{tpu_custom_call.1} parent=1 // pred_check
      _
    $region15: #{tpu_custom_call.1} parent=1 // pred_check_branch
      %47 = sbr.rel (0) target = $region17
    $region16: #{tpu_custom_call.1} parent=1 // pred_region
      %s49 = ssub.s32 4096, 4096
      %50 = vsyncadd [#allocation10], %s49
      %s51 = sshll.u32 [#allocation9], 4
      %s52 = int_to_ptr.vmem [resolvable:$true] %s51
      %57 = dma.hbm_to_vmem [thread:$0]  %s3, 4096, %s52, [#allocation10], 256, 256, 16
    $region17: #{tpu_custom_call.1} parent=1 // pred_fallthru
      _
    // Predicated region
    $region18: #{tpu_custom_call.1} parent=1 // pred_check
      _
    $region19: #{tpu_custom_call.1} parent=1 // pred_check_branch
      %59 = sbr.rel (0) target = $region21
    $region20: #{tpu_custom_call.1} parent=1 // pred_region
      %s61 = ssub.s32 2048, 2048
      %62 = vsyncadd [#allocation10], %s61
      %s63 = sshll.u32 [#allocation11], 4
      %s64 = int_to_ptr.vmem [resolvable:$true] %s63
      %69 = dma.hbm_to_vmem [thread:$0]  %s4, 2048, %s64, [#allocation10], 128, 128, 8
    $region21: #{tpu_custom_call.1} parent=1 // pred_fallthru
      _
    // Predicated region
    $region22: #{tpu_custom_call.1} parent=1 // pred_check
      _
    $region23: #{tpu_custom_call.1} parent=1 // pred_check_branch
      %71 = sbr.rel (0) target = $region25
    $region24: #{tpu_custom_call.1} parent=1 // pred_region
      %72 = dma.done [#allocation4], 128
    $region25: #{tpu_custom_call.1} parent=1 // pred_fallthru
      _
    // Predicated region
    $region26: #{tpu_custom_call.1} parent=1 // pred_check
      _
    $region27: #{tpu_custom_call.1} parent=1 // pred_check_branch
      %74 = sbr.rel (0) target = $region29
    $region28: #{tpu_custom_call.1} parent=1 // pred_region
      %75 = dma.done [#allocation7], 128
    $region29: #{tpu_custom_call.1} parent=1 // pred_fallthru
      _
    // Predicated region
    $region30: #{tpu_custom_call.1} parent=1 // pred_check
      _
    $region31: #{tpu_custom_call.1} parent=1 // pred_check_branch
      %77 = sbr.rel (0) target = $region33
    $region32: #{tpu_custom_call.1} parent=1 // pred_region
      %78 = dma.done [#allocation7], 768
    $region33: #{tpu_custom_call.1} parent=1 // pred_fallthru
      _
    // Predicated region
    $region34: #{tpu_custom_call.1} parent=1 // pred_check
      _
    $region35: #{tpu_custom_call.1} parent=1 // pred_check_branch
      %80 = sbr.rel (0) target = $region37
    $region36: #{tpu_custom_call.1} parent=1 // pred_region
      %81 = dma.done [#allocation10], 4096
    $region37: #{tpu_custom_call.1} parent=1 // pred_fallthru
      _
    // Predicated region
    $region38: #{tpu_custom_call.1} parent=1 // pred_check
      _
    $region39: #{tpu_custom_call.1} parent=1 // pred_check_branch
      %83 = sbr.rel (0) target = $region41
    $region40: #{tpu_custom_call.1} parent=1 // pred_region
      %84 = dma.done [#allocation10], 2048
    $region41: #{tpu_custom_call.1} parent=1 // pred_fallthru
      _
    %p85 = scmp.eq.s32.totalorder 0, 0
    // Predicated region
    $region42: #{tpu_custom_call.1} parent=1 // pred_check
      %p86 = pneg %p85
    $region43: #{tpu_custom_call.1} parent=1 // pred_check_branch
      %88 = sbr.rel (%p86) target = $region45
    $region44: #{tpu_custom_call.1} parent=1 // pred_region
      %v89 = vld [vmem:[#allocation6] sm:$0xff]
      %90 = vst [vmem:[#allocation2] sm:$0xff] %v89
    $region45: #{tpu_custom_call.1} parent=1 // pred_fallthru
      _
    %v91 = vld [vmem:[#allocation2] sm:$0xff]
    %v92 = vld [vmem:[#allocation3] sm:$0xff]
    %v93 = vld [vmem:[#allocation8] sm:$0xff]
    %v94 = vld [vmem:[#allocation8 + $0x8] sm:$0xff]
    %v95 = vld [vmem:[#allocation8 + $0x10] sm:$0xff]
    %v96 = vld [vmem:[#allocation8 + $0x18] sm:$0xff]
    %v97 = vld [vmem:[#allocation8 + $0x20] sm:$0xff]
    %v98 = vld [vmem:[#allocation8 + $0x28] sm:$0xff]
    %vm99 = vcmask 130048
    %v101 = vsel %vm99, %v92, 0
    %103 = vmatprep.subr.mxu0 %v94
    %104 = vmatpush1.msra.mxu0 %v93
    %105 = vmatprep.subr.mxu0 %v97
    %106 = vmatpush1.msra.mxu0 %v96
    %107 = vmatprep.subr.mxu0 0.0
    %108 = vmatpush1.msra.mxu0 0.0
    %109 = vmatprep.subr.mxu0 0.0
    %110 = vmatpush1.msra.mxu0 0.0
    %111 = vmatprep.subr.mxu0 0.0
    %112 = vmatpush1.msra.mxu0 0.0
    %113 = vmatprep.subr.mxu0 0.0
    %114 = vmatpush1.msra.mxu0 0.0
    %115 = vmatprep.subr.mxu0 0.0
    %116 = vmatpush1.msra.mxu0 0.0
    %117 = vmatprep.subr.mxu0 0.0
    %118 = vmatpush1.msra.mxu0 0.0
    %119 = vmatprep.subr.mxu0 0.0
    %120 = vmatpush1.msra.mxu0 0.0
    %121 = vmatprep.subr.mxu0 0.0
    %122 = vmatpush1.msra.mxu0 0.0
    %123 = vmatprep.subr.mxu0 0.0
    %124 = vmatpush1.msra.mxu0 0.0
    %125 = vmatprep.subr.mxu0 0.0
    %126 = vmatpush1.msra.mxu0 0.0
    %127 = vmatprep.subr.mxu0 0.0
    %128 = vmatpush1.msra.mxu0 0.0
    %129 = vmatprep.subr.mxu0 0.0
    %130 = vmatpush1.msra.mxu0 0.0
    %131 = vmatprep.subr.mxu0 0.0
    %132 = vmatpush1.msra.mxu0 0.0
    %133 = vmatprep.subr.mxu0 0.0
    %134 = vmatpush1.msra.mxu0 0.0
    %135 = vmatprep.subr.mxu0 0.0
    %136 = vmatpush1.msra.mxu0 0.0
    %137 = vmatprep.subr.mxu0 0.0
    %138 = vmatpush1.msra.mxu0 0.0
    %139 = vmatprep.subr.mxu0 0.0
    %140 = vmatpush1.msra.mxu0 0.0
    %141 = vmatprep.subr.mxu0 0.0
    %142 = vmatpush1.msra.mxu0 0.0
    %143 = vmatprep.subr.mxu0 0.0
    %144 = vmatpush1.msra.mxu0 0.0
    %145 = vmatprep.subr.mxu0 0.0
    %146 = vmatpush1.msra.mxu0 0.0
    %147 = vmatprep.subr.mxu0 0.0
    %148 = vmatpush1.msra.mxu0 0.0
    %149 = vmatprep.subr.mxu0 0.0
    %150 = vmatpush1.msra.mxu0 0.0
    %151 = vmatprep.subr.mxu0 0.0
    %152 = vmatpush1.msra.mxu0 0.0
    %153 = vmatprep.subr.mxu0 0.0
    %154 = vmatpush1.msra.mxu0 0.0
    %155 = vmatprep.subr.mxu0 0.0
    %156 = vmatpush1.msra.mxu0 0.0
    %157 = vmatprep.subr.mxu0 0.0
    %158 = vmatpush1.msra.mxu0 0.0
    %159 = vmatprep.subr.mxu0 0.0
    %160 = vmatpush1.msra.mxu0 0.0
    %161 = vmatprep.subr.mxu0 0.0
    %162 = vmatpush1.msra.mxu0 0.0
    %163 = vmatprep.subr.mxu0 0.0
    %164 = vmatpush1.msra.mxu0 0.0
    %165 = vmatprep.subr.mxu0 0.0
    %166 = vmatpush1.msra.mxu0 0.0
    %167 = vmatprep.mubr.f32.mxu0 0.0
    %168 = vmatmul.mubr.f32.gmra.mrb[0].mxu0 %v101
    %v169 = vpop.f32.mrb[0].mxu0
    %v170 = vadd.f32 0.0, %v169
    %v171 = vpop.f32.mrb[0].mxu0
    %v172 = vadd.f32 0.0, %v171
    %173 = vdwg.mxu0
    %174 = vmatprep.subr.mxu0 0.0
    %175 = vmatpush1.msra.mxu0 %v95
    %176 = vmatprep.subr.mxu0 0.0
    %177 = vmatpush1.msra.mxu0 %v98
    %178 = vmatprep.subr.mxu0 0.0
    %179 = vmatpush1.msra.mxu0 0.0
    %180 = vmatprep.subr.mxu0 0.0
    %181 = vmatpush1.msra.mxu0 0.0
    %182 = vmatprep.subr.mxu0 0.0
    %183 = vmatpush1.msra.mxu0 0.0
    %184 = vmatprep.subr.mxu0 0.0
    %185 = vmatpush1.msra.mxu0 0.0
    %186 = vmatprep.subr.mxu0 0.0
    %187 = vmatpush1.msra.mxu0 0.0
    %188 = vmatprep.subr.mxu0 0.0
    %189 = vmatpush1.msra.mxu0 0.0
    %190 = vmatprep.subr.mxu0 0.0
    %191 = vmatpush1.msra.mxu0 0.0
    %192 = vmatprep.subr.mxu0 0.0
    %193 = vmatpush1.msra.mxu0 0.0
    %194 = vmatprep.subr.mxu0 0.0
    %195 = vmatpush1.msra.mxu0 0.0
    %196 = vmatprep.subr.mxu0 0.0
    %197 = vmatpush1.msra.mxu0 0.0
    %198 = vmatprep.subr.mxu0 0.0
    %199 = vmatpush1.msra.mxu0 0.0
    %200 = vmatprep.subr.mxu0 0.0
    %201 = vmatpush1.msra.mxu0 0.0
    %202 = vmatprep.subr.mxu0 0.0
    %203 = vmatpush1.msra.mxu0 0.0
    %204 = vmatprep.subr.mxu0 0.0
    %205 = vmatpush1.msra.mxu0 0.0
    %206 = vmatprep.subr.mxu0 0.0
    %207 = vmatpush1.msra.mxu0 0.0
    %208 = vmatprep.subr.mxu0 0.0
    %209 = vmatpush1.msra.mxu0 0.0
    %210 = vmatprep.subr.mxu0 0.0
    %211 = vmatpush1.msra.mxu0 0.0
    %212 = vmatprep.subr.mxu0 0.0
    %213 = vmatpush1.msra.mxu0 0.0
    %214 = vmatprep.subr.mxu0 0.0
    %215 = vmatpush1.msra.mxu0 0.0
    %216 = vmatprep.subr.mxu0 0.0
    %217 = vmatpush1.msra.mxu0 0.0
    %218 = vmatprep.subr.mxu0 0.0
    %219 = vmatpush1.msra.mxu0 0.0
    %220 = vmatprep.subr.mxu0 0.0
    %221 = vmatpush1.msra.mxu0 0.0
    %222 = vmatprep.subr.mxu0 0.0
    %223 = vmatpush1.msra.mxu0 0.0
    %224 = vmatprep.subr.mxu0 0.0
    %225 = vmatpush1.msra.mxu0 0.0
    %226 = vmatprep.subr.mxu0 0.0
    %227 = vmatpush1.msra.mxu0 0.0
    %228 = vmatprep.subr.mxu0 0.0
    %229 = vmatpush1.msra.mxu0 0.0
    %230 = vmatprep.subr.mxu0 0.0
    %231 = vmatpush1.msra.mxu0 0.0
    %232 = vmatprep.subr.mxu0 0.0
    %233 = vmatpush1.msra.mxu0 0.0
    %234 = vmatprep.subr.mxu0 0.0
    %235 = vmatpush1.msra.mxu0 0.0
    %236 = vmatprep.subr.mxu0 0.0
    %237 = vmatpush1.msra.mxu0 0.0
    %238 = vmatprep.mubr.f32.mxu0 0.0
    %239 = vmatmul.mubr.f32.gmra.mrb[0].mxu0 %v101
    %v240 = vpop.f32.mrb[0].mxu0
    %v241 = vadd.f32 0.0, %v240
    %v242 = vpop.f32.mrb[0].mxu0
    %243 = vdwg.mxu0
    %v244 = vld [vmem:[#allocation9] sm:$0xff]
    %v245 = vld [vmem:[#allocation9 + $0x8] sm:$0xff]
    %v246 = vld [vmem:[#allocation9 + $0x10] sm:$0xff]
    %v247 = vld [vmem:[#allocation9 + $0x18] sm:$0xff]
    %v248 = vld [vmem:[#allocation9 + $0x20] sm:$0xff]
    %v249 = vld [vmem:[#allocation9 + $0x28] sm:$0xff]
    %v250 = vld [vmem:[#allocation9 + $0x30] sm:$0xff]
    %v251 = vld [vmem:[#allocation9 + $0x38] sm:$0xff]
    %v252 = vld [vmem:[#allocation9 + $0x40] sm:$0xff]
    %v253 = vld [vmem:[#allocation9 + $0x48] sm:$0xff]
    %v254 = vld [vmem:[#allocation9 + $0x50] sm:$0xff]
    %v255 = vld [vmem:[#allocation9 + $0x58] sm:$0xff]
    %v256 = vld [vmem:[#allocation9 + $0x60] sm:$0xff]
    %v257 = vld [vmem:[#allocation9 + $0x68] sm:$0xff]
    %v258 = vld [vmem:[#allocation9 + $0x70] sm:$0xff]
    %v259 = vld [vmem:[#allocation9 + $0x78] sm:$0xff]
    %v260 = vld [vmem:[#allocation9 + $0x80] sm:$0xff]
    %v261 = vld [vmem:[#allocation9 + $0x88] sm:$0xff]
    %v262 = vld [vmem:[#allocation9 + $0x90] sm:$0xff]
    %v263 = vld [vmem:[#allocation9 + $0x98] sm:$0xff]
    %v264 = vld [vmem:[#allocation9 + $0xa0] sm:$0xff]
    %v265 = vld [vmem:[#allocation9 + $0xa8] sm:$0xff]
    %v266 = vld [vmem:[#allocation9 + $0xb0] sm:$0xff]
    %v267 = vld [vmem:[#allocation9 + $0xb8] sm:$0xff]
    %v268 = vld [vmem:[#allocation9 + $0xc0] sm:$0xff]
    %v269 = vld [vmem:[#allocation9 + $0xc8] sm:$0xff]
    %v270 = vld [vmem:[#allocation9 + $0xd0] sm:$0xff]
    %v271 = vld [vmem:[#allocation9 + $0xd8] sm:$0xff]
    %v272 = vld [vmem:[#allocation9 + $0xe0] sm:$0xff]
    %v273 = vld [vmem:[#allocation9 + $0xe8] sm:$0xff]
    %v274 = vld [vmem:[#allocation9 + $0xf0] sm:$0xff]
    %v275 = vld [vmem:[#allocation9 + $0xf8] sm:$0xff]
    %276 = vmatprep.subr.mxu0 %v245
    %277 = vmatpush1.msra.mxu0 %v244
    %278 = vmatprep.subr.mxu0 %v247
    %279 = vmatpush1.msra.mxu0 %v246
    %280 = vmatprep.subr.mxu0 %v249
    %281 = vmatpush1.msra.mxu0 %v248
    %282 = vmatprep.subr.mxu0 %v251
    %283 = vmatpush1.msra.mxu0 %v250
    %284 = vmatprep.subr.mxu0 %v253
    %285 = vmatpush1.msra.mxu0 %v252
    %286 = vmatprep.subr.mxu0 %v255
    %287 = vmatpush1.msra.mxu0 %v254
    %288 = vmatprep.subr.mxu0 %v257
    %289 = vmatpush1.msra.mxu0 %v256
    %290 = vmatprep.subr.mxu0 %v259
    %291 = vmatpush1.msra.mxu0 %v258
    %292 = vmatprep.subr.mxu0 %v261
    %293 = vmatpush1.msra.mxu0 %v260
    %294 = vmatprep.subr.mxu0 %v263
    %295 = vmatpush1.msra.mxu0 %v262
    %296 = vmatprep.subr.mxu0 %v265
    %297 = vmatpush1.msra.mxu0 %v264
    %298 = vmatprep.subr.mxu0 %v267
    %299 = vmatpush1.msra.mxu0 %v266
    %300 = vmatprep.subr.mxu0 %v269
    %301 = vmatpush1.msra.mxu0 %v268
    %302 = vmatprep.subr.mxu0 %v271
    %303 = vmatpush1.msra.mxu0 %v270
    %304 = vmatprep.subr.mxu0 %v273
    %305 = vmatpush1.msra.mxu0 %v272
    %306 = vmatprep.subr.mxu0 %v275
    %307 = vmatpush1.msra.mxu0 %v274
    %308 = vmatprep.subr.mxu0 0.0
    %309 = vmatpush1.msra.mxu0 0.0
    %310 = vmatprep.subr.mxu0 0.0
    %311 = vmatpush1.msra.mxu0 0.0
    %312 = vmatprep.subr.mxu0 0.0
    %313 = vmatpush1.msra.mxu0 0.0
    %314 = vmatprep.subr.mxu0 0.0
    %315 = vmatpush1.msra.mxu0 0.0
    %316 = vmatprep.subr.mxu0 0.0
    %317 = vmatpush1.msra.mxu0 0.0
    %318 = vmatprep.subr.mxu0 0.0
    %319 = vmatpush1.msra.mxu0 0.0
    %320 = vmatprep.subr.mxu0 0.0
    %321 = vmatpush1.msra.mxu0 0.0
    %322 = vmatprep.subr.mxu0 0.0
    %323 = vmatpush1.msra.mxu0 0.0
    %324 = vmatprep.subr.mxu0 0.0
    %325 = vmatpush1.msra.mxu0 0.0
    %326 = vmatprep.subr.mxu0 0.0
    %327 = vmatpush1.msra.mxu0 0.0
    %328 = vmatprep.subr.mxu0 0.0
    %329 = vmatpush1.msra.mxu0 0.0
    %330 = vmatprep.subr.mxu0 0.0
    %331 = vmatpush1.msra.mxu0 0.0
    %332 = vmatprep.subr.mxu0 0.0
    %333 = vmatpush1.msra.mxu0 0.0
    %334 = vmatprep.subr.mxu0 0.0
    %335 = vmatpush1.msra.mxu0 0.0
    %336 = vmatprep.subr.mxu0 0.0
    %337 = vmatpush1.msra.mxu0 0.0
    %338 = vmatprep.subr.mxu0 0.0
    %339 = vmatpush1.msra.mxu0 0.0
    %340 = vmatprep.mubr.f32.mxu0 0.0
    %341 = vmatmul.mubr.f32.gmra.mrb[0].mxu0 %v91
    %v342 = vpop.f32.mrb[0].mxu0
    %v343 = vadd.f32 0.0, %v342
    %v344 = vpop.f32.mrb[0].mxu0
    %v345 = vadd.f32 0.0, %v344
    %346 = vdwg.mxu0
    %v347 = vadd.f32 %v170, %v343
    %v348 = vadd.f32 %v172, %v345
    %v349 = vmul.f32 %v347, 0.5
    %v350 = vmul.f32 %v348, 0.5
    %v351 = vtanh.pop %v349
    %v352 = vtanh.pop %v350
    %v353 = vadd.f32 %v351, 1.0
    %v354 = vadd.f32 %v352, 1.0
    %v355 = vmul.f32 %v353, 0.5
    %v356 = vmul.f32 %v354, 0.5
    %v357 = vmul.f32 %v356, %v91
    %v358 = vld [vmem:[#allocation11] sm:$0xff]
    %v359 = vld [vmem:[#allocation11 + $0x8] sm:$0xff]
    %v360 = vld [vmem:[#allocation11 + $0x10] sm:$0xff]
    %v361 = vld [vmem:[#allocation11 + $0x18] sm:$0xff]
    %v362 = vld [vmem:[#allocation11 + $0x20] sm:$0xff]
    %v363 = vld [vmem:[#allocation11 + $0x28] sm:$0xff]
    %v364 = vld [vmem:[#allocation11 + $0x30] sm:$0xff]
    %v365 = vld [vmem:[#allocation11 + $0x38] sm:$0xff]
    %v366 = vld [vmem:[#allocation11 + $0x40] sm:$0xff]
    %v367 = vld [vmem:[#allocation11 + $0x48] sm:$0xff]
    %v368 = vld [vmem:[#allocation11 + $0x50] sm:$0xff]
    %v369 = vld [vmem:[#allocation11 + $0x58] sm:$0xff]
    %v370 = vld [vmem:[#allocation11 + $0x60] sm:$0xff]
    %v371 = vld [vmem:[#allocation11 + $0x68] sm:$0xff]
    %v372 = vld [vmem:[#allocation11 + $0x70] sm:$0xff]
    %v373 = vld [vmem:[#allocation11 + $0x78] sm:$0xff]
    %374 = vmatprep.subr.mxu0 0.0
    %375 = vmatpush1.msra.mxu0 %v358
    %376 = vmatprep.subr.mxu0 0.0
    %377 = vmatpush1.msra.mxu0 %v359
    %378 = vmatprep.subr.mxu0 0.0
    %379 = vmatpush1.msra.mxu0 %v360
    %380 = vmatprep.subr.mxu0 0.0
    %381 = vmatpush1.msra.mxu0 %v361
    %382 = vmatprep.subr.mxu0 0.0
    %383 = vmatpush1.msra.mxu0 %v362
    %384 = vmatprep.subr.mxu0 0.0
    %385 = vmatpush1.msra.mxu0 %v363
    %386 = vmatprep.subr.mxu0 0.0
    %387 = vmatpush1.msra.mxu0 %v364
    %388 = vmatprep.subr.mxu0 0.0
    %389 = vmatpush1.msra.mxu0 %v365
    %390 = vmatprep.subr.mxu0 0.0
    %391 = vmatpush1.msra.mxu0 %v366
    %392 = vmatprep.subr.mxu0 0.0
    %393 = vmatpush1.msra.mxu0 %v367
    %394 = vmatprep.subr.mxu0 0.0
    %395 = vmatpush1.msra.mxu0 %v368
    %396 = vmatprep.subr.mxu0 0.0
    %397 = vmatpush1.msra.mxu0 %v369
    %398 = vmatprep.subr.mxu0 0.0
    %399 = vmatpush1.msra.mxu0 %v370
    %400 = vmatprep.subr.mxu0 0.0
    %401 = vmatpush1.msra.mxu0 %v371
    %402 = vmatprep.subr.mxu0 0.0
    %403 = vmatpush1.msra.mxu0 %v372
    %404 = vmatprep.subr.mxu0 0.0
    %405 = vmatpush1.msra.mxu0 %v373
    %406 = vmatprep.subr.mxu0 0.0
    %407 = vmatpush1.msra.mxu0 0.0
    %408 = vmatprep.subr.mxu0 0.0
    %409 = vmatpush1.msra.mxu0 0.0
    %410 = vmatprep.subr.mxu0 0.0
    %411 = vmatpush1.msra.mxu0 0.0
    %412 = vmatprep.subr.mxu0 0.0
    %413 = vmatpush1.msra.mxu0 0.0
    %414 = vmatprep.subr.mxu0 0.0
    %415 = vmatpush1.msra.mxu0 0.0
    %416 = vmatprep.subr.mxu0 0.0
    %417 = vmatpush1.msra.mxu0 0.0
    %418 = vmatprep.subr.mxu0 0.0
    %419 = vmatpush1.msra.mxu0 0.0
    %420 = vmatprep.subr.mxu0 0.0
    %421 = vmatpush1.msra.mxu0 0.0
    %422 = vmatprep.subr.mxu0 0.0
    %423 = vmatpush1.msra.mxu0 0.0
    %424 = vmatprep.subr.mxu0 0.0
    %425 = vmatpush1.msra.mxu0 0.0
    %426 = vmatprep.subr.mxu0 0.0
    %427 = vmatpush1.msra.mxu0 0.0
    %428 = vmatprep.subr.mxu0 0.0
    %429 = vmatpush1.msra.mxu0 0.0
    %430 = vmatprep.subr.mxu0 0.0
    %431 = vmatpush1.msra.mxu0 0.0
    %432 = vmatprep.subr.mxu0 0.0
    %433 = vmatpush1.msra.mxu0 0.0
    %434 = vmatprep.subr.mxu0 0.0
    %435 = vmatpush1.msra.mxu0 0.0
    %436 = vmatprep.subr.mxu0 0.0
    %437 = vmatpush1.msra.mxu0 0.0
    %438 = vmatprep.mubr.f32.mxu0 0.0
    %439 = vmatmul.mubr.f32.gmra.mrb[0].mxu0 %v357
    %v440 = vpop.f32.mrb[0].mxu0
    %v441 = vadd.f32 0.0, %v440
    %v442 = vpop.f32.mrb[0].mxu0
    %443 = vdwg.mxu0
    %v444 = vadd.f32 %v241, %v441
    %v445 = vtanh.pop %v444
    %v446 = vsub.f32 %v445, %v91
    %v447 = vmul.f32 %v355, %v446
    %v448 = vadd.f32 %v91, %v447
    %449 = vst [vmem:[#allocation2] sm:$0xff] %v448
    %450 = vst [vmem:[#allocation12] sm:$0xff] %v448
    // Predicated region
    $region46: #{tpu_custom_call.1} parent=1 // pred_check
      _
    $region47: #{tpu_custom_call.1} parent=1 // pred_check_branch
      %452 = sbr.rel (0) target = $region49
    $region48: #{tpu_custom_call.1} parent=1 // pred_region
      %s454 = ssub.s32 128, 128
      %455 = vsyncadd [#allocation5], %s454
      %s457 = sshll.u32 [#allocation12], 4
      %s458 = int_to_ptr.vmem [resolvable:$true] %s457
      %460 = dma.vmem_to_hbm [thread:$0]  %s458, 128, %s5, [#allocation5]
    $region49: #{tpu_custom_call.1} parent=1 // pred_fallthru
      _
    // Predicated region
    $region50: #{tpu_custom_call.1} parent=1 // pred_check
      _
    $region51: #{tpu_custom_call.1} parent=1 // pred_check_branch
      %462 = sbr.rel (0) target = $region53
    $region52: #{tpu_custom_call.1} parent=1 // pred_region
      %463 = dma.done [#allocation5], 128
    $region53: #{tpu_custom_call.1} parent=1 // pred_fallthru
      _
    %464 = vsyncpa [#allocation4], 1
    %465 = vsyncpa [#allocation7], 1
    %466 = vsyncpa [#allocation10], 1
    %467 = vsyncpa [#allocation5], 1

</llo_original>
